<compile_context>
chip_gen: v7x
topology: tpu7x:2x2x1
jax: 0.10.0
libtpu: 0.0.40
codegen_flags: <defaults>
</compile_context>

<pallas_src>
import jax
import jax.numpy as jnp
from jax import lax
from jax.experimental import pallas as pl
from jax.experimental.pallas import tpu as pltpu


def _indexed_linear_kernel(x_ref, w_ref, b_ref, o_ref):
    # x_ref : VMEM (B, H)   -- the selected token for every batch element (grid-invariant)
    # w_ref : VMEM (tn, H)  -- one vocab tile of the weight (nn.Linear layout: (out, in))
    # b_ref : VMEM (1, tn)  -- matching bias tile
    # o_ref : VMEM (B, tn)  -- matching output tile (lane-dense)
    y = lax.dot_general(
        x_ref[...], w_ref[...],
        dimension_numbers=(((1,), (1,)), ((), ())),   # contract on H
        preferred_element_type=jnp.float32,
    )
    o_ref[...] = (y + b_ref[...]).astype(o_ref.dtype)


def _vmem_capacity_bytes():
    """Per-core VMEM capacity; falls back to the smallest current generation (v7x)."""
    try:
        return pltpu.get_tpu_info().vmem_capacity_bytes
    except Exception:
        return 64 << 20  # v7x per-TC — conservative


def _pick_tn(V, H, w_itemsize, weight_budget_bytes):
    """Largest vocab tile whose double-buffered weight stream fits the VMEM budget."""
    tn_cap = max(128, weight_budget_bytes // (2 * H * w_itemsize))
    if V <= tn_cap:
        return V                                   # whole weight fits: single grid step
    tn = (tn_cap // 128) * 128
    while tn > 128 and V % tn != 0:                # keep exact tiling (no padded blocks)
        tn -= 128
    if V % tn != 0:
        # Rare fallback: largest divisor of V that fits the budget.
        tn = max(d for d in range(1, int(min(V, tn_cap)) + 1) if V % d == 0)
    return tn


def indexed_input_linear(x, weight, bias, index):
    """Pallas equivalent of _IndexedInputLinear.forward.

    x      : (B, S, H) float
    weight : (V, H)    float  (nn.Linear weight layout; bf16 OK and ~2x faster)
    bias   : (V,)      float
    index  : (1,)      int32  (the registered buffer)
    returns: (B, 1, V)
    """
    B, S, H = x.shape
    V, H_w = weight.shape
    assert H == H_w

    # --- slice the single token in the wrapper (tiny HBM traffic: B*H elements) ---
    idx = jnp.clip(index[0].astype(jnp.int32), 0, S - 1)      # guard against bad index
    x_tok = lax.dynamic_slice(x, (0, idx, 0), (B, 1, H)).reshape(B, H)
    bias2d = bias.reshape(1, V)

    # --- generation-aware tile sizing: fill VMEM with the weight double-buffer ---
    cap = _vmem_capacity_bytes()                               # 64 MiB (v7x) / 128 MiB (v5e/v6e)
    vmem_limit = int(min(cap * 3 // 4, 96 << 20))              # headroom below physical
    small_bufs = 2 * (B * H + V // 1 * 0 + B * 1024) * 4 + (4 << 20)  # x/out/bias dbl-buf + misc
    weight_budget = max(8 << 20, vmem_limit - small_bufs)
    tn = _pick_tn(V, H, weight.dtype.itemsize, weight_budget)

    grid = (V // tn,)

    cost = pl.CostEstimate(
        flops=2 * B * H * V,
        transcendentals=0,
        bytes_accessed=(V * H * weight.dtype.itemsize
                        + B * H * x.dtype.itemsize
                        + V * bias.dtype.itemsize
                        + B * V * x.dtype.itemsize),
    )

    out = pl.pallas_call(
        _indexed_linear_kernel,
        out_shape=jax.ShapeDtypeStruct((B, V), x.dtype),
        grid=grid,
        in_specs=[
            pl.BlockSpec((B, H), lambda j: (0, 0)),    # grid-invariant token slab
            pl.BlockSpec((tn, H), lambda j: (j, 0)),   # streamed weight tile
            pl.BlockSpec((1, tn), lambda j: (0, j)),   # bias tile
        ],
        out_specs=pl.BlockSpec((B, tn), lambda j: (0, j)),     # lane-dense output block
        compiler_params=pltpu.CompilerParams(
            dimension_semantics=("parallel",),          # v7x: shard vocab tiles across 2 TCs
            vmem_limit_bytes=vmem_limit,
        ),
        cost_estimate=cost,
    )(x_tok, weight, bias2d)

    return out.reshape(B, 1, V)                         # match the PyTorch module's (B, 1, V)


if __name__ == "__main__":
    # Small, module-consistent shapes: batch=2, seq=8, hidden=32, vocab(out_features)=256.
    B, S, H, V = 2, 8, 32, 256

    key = jax.random.PRNGKey(0)
    kx, kw, kb = jax.random.split(key, 3)

    x = jax.random.normal(kx, (B, S, H), dtype=jnp.float32)
    weight = jax.random.normal(kw, (V, H), dtype=jnp.float32) * 0.05   # nn.Linear.weight: (out, in)
    bias = jax.random.normal(kb, (V,), dtype=jnp.float32) * 0.05       # nn.Linear.bias:   (out,)
    index = jnp.array([3], dtype=jnp.int32)                            # the registered buffer

    out = indexed_input_linear(x, weight, bias, index)
    out = jax.block_until_ready(out)

    # Reference (pure JAX) check of the exact PyTorch semantics.
    ref = jnp.einsum("bh,vh->bv", x[:, index[0], :], weight) + bias
    ref = ref[:, None, :]                                              # (B, 1, V)
    assert out.shape == (B, 1, V), out.shape
    assert jnp.allclose(out, ref, atol=1e-4, rtol=1e-4)

    print("KERNEL_OK")
</pallas_src>

<mosaic_0001>
module attributes {stable_mosaic.version = 11 : i64} {
  func.func @_indexed_linear_kernel(%arg0: i32, %arg1: memref<2x32xf32, #tpu.memory_space<vmem>>, %arg2: memref<256x32xf32, #tpu.memory_space<vmem>>, %arg3: memref<1x256xf32, #tpu.memory_space<vmem>>, %arg4: memref<2x256xf32, #tpu.memory_space<vmem>>) attributes {dimension_semantics = [#tpu.dimension_semantics<parallel>], iteration_bounds = array<i64: 1>, scalar_prefetch = 0 : i64, scratch_operands = 0 : i64, tpu.core_type = #tpu.core_type<tc>, window_params = [{pipeline_mode = #tpu.pipeline_mode<synchronous>, transform_indices = @transform_0, window_bounds = array<i64: 2, 32>}, {transform_indices = @transform_1, window_bounds = array<i64: 256, 32>}, {transform_indices = @transform_2, window_bounds = array<i64: 1, 256>}, {transform_indices = @transform_3, window_bounds = array<i64: 2, 256>}]} {
    %c0 = arith.constant 0 : index
    %c0_0 = arith.constant 0 : index
    %0 = vector.load %arg1[%c0, %c0_0] : memref<2x32xf32, #tpu.memory_space<vmem>>, vector<2x32xf32>
    %c0_1 = arith.constant 0 : index
    %c0_2 = arith.constant 0 : index
    %1 = vector.load %arg2[%c0_1, %c0_2] : memref<256x32xf32, #tpu.memory_space<vmem>>, vector<256x32xf32>
    %cst = arith.constant dense<0.000000e+00> : vector<2x256xf32>
    %2 = tpu.matmul %0, %1, %cst {dimension_numbers = #tpu.dot_dimension_numbers<[1], [1], [0], [0], [0, 0, 1, 0], [], []>} : vector<2x32xf32>, vector<256x32xf32>, vector<2x256xf32> -> vector<2x256xf32>
    %c0_3 = arith.constant 0 : index
    %c0_4 = arith.constant 0 : index
    %3 = vector.load %arg3[%c0_3, %c0_4] : memref<1x256xf32, #tpu.memory_space<vmem>>, vector<1x256xf32>
    %4 = vector.broadcast %3 : vector<1x256xf32> to vector<2x256xf32>
    %5 = arith.addf %2, %4 : vector<2x256xf32>
    %c0_5 = arith.constant 0 : index
    %c0_6 = arith.constant 0 : index
    %6 = vector.load %arg4[%c0_5, %c0_6] : memref<2x256xf32, #tpu.memory_space<vmem>>, vector<2x256xf32>
    tpu.vector_store %arg4[%c0_5, %c0_6], %5 {strides = array<i32>} : memref<2x256xf32, #tpu.memory_space<vmem>>, vector<2x256xf32>,
    return
  }
  func.func @transform_0(%arg0: i32) -> (i32, i32) {
    %c0_i32 = arith.constant 0 : i32
    %c0_i32_0 = arith.constant 0 : i32
    %c0_i32_1 = arith.constant 0 : i32
    return %c0_i32, %c0_i32_0 : i32, i32
  }
  func.func @transform_1(%arg0: i32) -> (i32, i32) {
    %c0_i32 = arith.constant 0 : i32
    %c0_i32_0 = arith.constant 0 : i32
    return %arg0, %c0_i32 : i32, i32
  }
  func.func @transform_2(%arg0: i32) -> (i32, i32) {
    %c0_i32 = arith.constant 0 : i32
    %c0_i32_0 = arith.constant 0 : i32
    return %c0_i32, %arg0 : i32, i32
  }
  func.func @transform_3(%arg0: i32) -> (i32, i32) {
    %c0_i32 = arith.constant 0 : i32
    %c0_i32_0 = arith.constant 0 : i32
    return %c0_i32, %arg0 : i32, i32
  }
}

</mosaic_0001>

<llo_original>
// kernel: tpu_custom_call.1
$region0: #{tpu_custom_call.1}
  #allocation0 [shape = 'u32[]', space=smem, size = 0x4, offset = 0x4, fixed_abs, tag = 'smem constant byte address 0x4 - core index']
  #allocation1 [shape = 'u32[144,128]{1,0:T(1,128)}', space=vmem, size = 0x12000, scoped, tag = 'internal scratch']
  %s0 = inlined_call_operand.vmem [shape: f32[2,32], index: 0, kind: input, shape index: {}]
  %s1 = inlined_call_operand.vmem [shape: f32[256,32], index: 1, kind: input, shape index: {}]
  %s2 = inlined_call_operand.vmem [shape: f32[1,256], index: 2, kind: input, shape index: {}]
  %s3 = inlined_call_operand.hbm [shape: f32[2,256], index: 3, kind: output, shape index: {}]
  %s4 = sld [smem:[#allocation0]]
  $region22: #{tpu_custom_call.1} parent=0
    _
  %s6 = ssub.s32 1, %s4
  %s7 = scalar_select 0, %s6, %s4
  $region1: #{tpu_custom_call.1} parent=0
    #allocation2 [shape = 'u8[2048]{0}', space=vmem, size = 0x800, scoped, tag = 'output window, operand 0, single buffered']
    #allocation3 [shape = 's32[1]{0}', space=sflag, size = 0x4, scoped, tag = 'scoped memory for tpu_custom_call.1']
    %8 = vsyncpa [#allocation3], 0
    // Predicated region
    $region2: #{tpu_custom_call.1} parent=1 // pred_check
      _
    $region3: #{tpu_custom_call.1} parent=1 // pred_check_branch
      %10 = sbr.rel (0) target = $region5
    $region4: #{tpu_custom_call.1} parent=1 // pred_region
      _
    $region5: #{tpu_custom_call.1} parent=1 // pred_fallthru
      _
    // Predicated region
    $region6: #{tpu_custom_call.1} parent=1 // pred_check
      _
    $region7: #{tpu_custom_call.1} parent=1 // pred_check_branch
      %12 = sbr.rel (0) target = $region9
    $region8: #{tpu_custom_call.1} parent=1 // pred_region
      _
    $region9: #{tpu_custom_call.1} parent=1 // pred_fallthru
      _
    // Predicated region
    $region10: #{tpu_custom_call.1} parent=1 // pred_check
      _
    $region11: #{tpu_custom_call.1} parent=1 // pred_check_branch
      %14 = sbr.rel (0) target = $region13
    $region12: #{tpu_custom_call.1} parent=1 // pred_region
      _
    $region13: #{tpu_custom_call.1} parent=1 // pred_fallthru
      _
    %v15 = vld [vmem:[%s0] sm:$0x3]
    %v16 = vld [vmem:[%s1] sm:$0xff]
    %v17 = vld [vmem:[%s1 + $0x8] sm:$0xff]
    %v18 = vld [vmem:[%s1 + $0x10] sm:$0xff]
    %v19 = vld [vmem:[%s1 + $0x18] sm:$0xff]
    %v20 = vld [vmem:[%s1 + $0x20] sm:$0xff]
    %v21 = vld [vmem:[%s1 + $0x28] sm:$0xff]
    %v22 = vld [vmem:[%s1 + $0x30] sm:$0xff]
    %v23 = vld [vmem:[%s1 + $0x38] sm:$0xff]
    %v24 = vld [vmem:[%s1 + $0x40] sm:$0xff]
    %v25 = vld [vmem:[%s1 + $0x48] sm:$0xff]
    %v26 = vld [vmem:[%s1 + $0x50] sm:$0xff]
    %v27 = vld [vmem:[%s1 + $0x58] sm:$0xff]
    %v28 = vld [vmem:[%s1 + $0x60] sm:$0xff]
    %v29 = vld [vmem:[%s1 + $0x68] sm:$0xff]
    %v30 = vld [vmem:[%s1 + $0x70] sm:$0xff]
    %v31 = vld [vmem:[%s1 + $0x78] sm:$0xff]
    %v32 = vld [vmem:[%s1 + $0x80] sm:$0xff]
    %v33 = vld [vmem:[%s1 + $0x88] sm:$0xff]
    %v34 = vld [vmem:[%s1 + $0x90] sm:$0xff]
    %v35 = vld [vmem:[%s1 + $0x98] sm:$0xff]
    %v36 = vld [vmem:[%s1 + $0xa0] sm:$0xff]
    %v37 = vld [vmem:[%s1 + $0xa8] sm:$0xff]
    %v38 = vld [vmem:[%s1 + $0xb0] sm:$0xff]
    %v39 = vld [vmem:[%s1 + $0xb8] sm:$0xff]
    %v40 = vld [vmem:[%s1 + $0xc0] sm:$0xff]
    %v41 = vld [vmem:[%s1 + $0xc8] sm:$0xff]
    %v42 = vld [vmem:[%s1 + $0xd0] sm:$0xff]
    %v43 = vld [vmem:[%s1 + $0xd8] sm:$0xff]
    %v44 = vld [vmem:[%s1 + $0xe0] sm:$0xff]
    %v45 = vld [vmem:[%s1 + $0xe8] sm:$0xff]
    %v46 = vld [vmem:[%s1 + $0xf0] sm:$0xff]
    %v47 = vld [vmem:[%s1 + $0xf8] sm:$0xff]
    %v48 = vld [vmem:[%s2] sm:$0x3]
    %v50 = vlaneseq
    %v51 = vshrl.u32 %v50, 7
    %v52 = vsub.s32 0, %v51
    %v53 = vrot.slane %v48, %v52
    %v54 = vlaneseq
    %v55 = vshrl.u32 %v54, 7
    %v56 = vsub.s32 1, %v55
    %v57 = vrot.slane %v48, %v56
    %vm60 = vcmask 261120
    %v62 = vsel %vm60, %v15, 0
    %v65 = vsel %vm60, %v16, 0
    %v68 = vsel %vm60, %v17, 0
    %v71 = vsel %vm60, %v18, 0
    %v74 = vsel %vm60, %v19, 0
    %v77 = vsel %vm60, %v20, 0
    %v80 = vsel %vm60, %v21, 0
    %v83 = vsel %vm60, %v22, 0
    %v86 = vsel %vm60, %v23, 0
    %v89 = vsel %vm60, %v24, 0
    %v92 = vsel %vm60, %v25, 0
    %v95 = vsel %vm60, %v26, 0
    %v98 = vsel %vm60, %v27, 0
    %v101 = vsel %vm60, %v28, 0
    %v104 = vsel %vm60, %v29, 0
    %v107 = vsel %vm60, %v30, 0
    %v110 = vsel %vm60, %v31, 0
    %v113 = vsel %vm60, %v32, 0
    %v116 = vsel %vm60, %v33, 0
    %v119 = vsel %vm60, %v34, 0
    %v122 = vsel %vm60, %v35, 0
    %v125 = vsel %vm60, %v36, 0
    %v128 = vsel %vm60, %v37, 0
    %v131 = vsel %vm60, %v38, 0
    %v134 = vsel %vm60, %v39, 0
    %v137 = vsel %vm60, %v40, 0
    %v140 = vsel %vm60, %v41, 0
    %v143 = vsel %vm60, %v42, 0
    %v146 = vsel %vm60, %v43, 0
    %v149 = vsel %vm60, %v44, 0
    %v152 = vsel %vm60, %v45, 0
    %v155 = vsel %vm60, %v46, 0
    %v158 = vsel %vm60, %v47, 0
    %160 = vmatprep.subr.mxu0 0.0
    %161 = vmatpush1.xpose.msra.mxu0 %v65
    %162 = vmatprep.subr.mxu0 0.0
    %163 = vmatpush1.xpose.msra.mxu0 %v68
    %164 = vmatprep.subr.mxu0 0.0
    %165 = vmatpush1.xpose.msra.mxu0 %v71
    %166 = vmatprep.subr.mxu0 0.0
    %167 = vmatpush1.xpose.msra.mxu0 %v74
    %168 = vmatprep.subr.mxu0 0.0
    %169 = vmatpush1.xpose.msra.mxu0 %v77
    %170 = vmatprep.subr.mxu0 0.0
    %171 = vmatpush1.xpose.msra.mxu0 %v80
    %172 = vmatprep.subr.mxu0 0.0
    %173 = vmatpush1.xpose.msra.mxu0 %v83
    %174 = vmatprep.subr.mxu0 0.0
    %175 = vmatpush1.xpose.msra.mxu0 %v86
    %176 = vmatprep.subr.mxu0 0.0
    %177 = vmatpush1.xpose.msra.mxu0 %v89
    %178 = vmatprep.subr.mxu0 0.0
    %179 = vmatpush1.xpose.msra.mxu0 %v92
    %180 = vmatprep.subr.mxu0 0.0
    %181 = vmatpush1.xpose.msra.mxu0 %v95
    %182 = vmatprep.subr.mxu0 0.0
    %183 = vmatpush1.xpose.msra.mxu0 %v98
    %184 = vmatprep.subr.mxu0 0.0
    %185 = vmatpush1.xpose.msra.mxu0 %v101
    %186 = vmatprep.subr.mxu0 0.0
    %187 = vmatpush1.xpose.msra.mxu0 %v104
    %188 = vmatprep.subr.mxu0 0.0
    %189 = vmatpush1.xpose.msra.mxu0 %v107
    %190 = vmatprep.subr.mxu0 0.0
    %191 = vmatpush1.xpose.msra.mxu0 %v110
    %192 = vmatprep.subr.mxu0 0.0
    %193 = vmatpush1.xpose.msra.mxu0 %v113
    %194 = vmatprep.subr.mxu0 0.0
    %195 = vmatpush1.xpose.msra.mxu0 %v116
    %196 = vmatprep.subr.mxu0 0.0
    %197 = vmatpush1.xpose.msra.mxu0 %v119
    %198 = vmatprep.subr.mxu0 0.0
    %199 = vmatpush1.xpose.msra.mxu0 %v122
    %200 = vmatprep.subr.mxu0 0.0
    %201 = vmatpush1.xpose.msra.mxu0 %v125
    %202 = vmatprep.subr.mxu0 0.0
    %203 = vmatpush1.xpose.msra.mxu0 %v128
    %204 = vmatprep.subr.mxu0 0.0
    %205 = vmatpush1.xpose.msra.mxu0 %v131
    %206 = vmatprep.subr.mxu0 0.0
    %207 = vmatpush1.xpose.msra.mxu0 %v134
    %208 = vmatprep.subr.mxu0 0.0
    %209 = vmatpush1.xpose.msra.mxu0 %v137
    %210 = vmatprep.subr.mxu0 0.0
    %211 = vmatpush1.xpose.msra.mxu0 %v140
    %212 = vmatprep.subr.mxu0 0.0
    %213 = vmatpush1.xpose.msra.mxu0 %v143
    %214 = vmatprep.subr.mxu0 0.0
    %215 = vmatpush1.xpose.msra.mxu0 %v146
    %216 = vmatprep.subr.mxu0 0.0
    %217 = vmatpush1.xpose.msra.mxu0 %v149
    %218 = vmatprep.subr.mxu0 0.0
    %219 = vmatpush1.xpose.msra.mxu0 %v152
    %220 = vmatprep.subr.mxu0 0.0
    %221 = vmatpush1.xpose.msra.mxu0 %v155
    %222 = vmatprep.subr.mxu0 0.0
    %223 = vmatpush1.xpose.msra.mxu0 %v158
    %224 = vmatprep.mubr.f32.mxu0 0.0
    %225 = vmatmul.mubr.f32.gmra.mrb[0].mxu0 %v62
    %v226 = vpop.f32.mrb[0].mxu0
    %v227 = vadd.f32 %v53, %v226
    %v228 = vpop.f32.mrb[0].mxu0
    %v229 = vadd.f32 %v57, %v228
    %230 = vdwg.mxu0
    %v233 = vcombine.low %v227, %v229
    %v235 = vunpack.c.l.s4 1983009808
    %v236 = vunpack.c.0.s8 %v235
    %v237 = vlaneseq
    %v238 = vshrl.u32 %v237, 7
    %v239 = vsub.s32 %v236, %v238
    %v240 = vrot.slane %v233, %v239
    %242 = vst [vmem:[#allocation2] sm:$0xf] %v240
    // Predicated region
    $region14: #{tpu_custom_call.1} parent=1 // pred_check
      _
    $region15: #{tpu_custom_call.1} parent=1 // pred_check_branch
      %244 = sbr.rel (0) target = $region17
    $region16: #{tpu_custom_call.1} parent=1 // pred_region
      %s246 = ssub.s32 64, 64
      %247 = vsyncadd [#allocation3], %s246
      %s249 = sshll.u32 [#allocation2], 4
      %s250 = int_to_ptr.vmem [resolvable:$true] %s249
      %252 = dma.vmem_to_hbm [thread:$0]  %s250, 64, %s3, [#allocation3]
    $region17: #{tpu_custom_call.1} parent=1 // pred_fallthru
      _
    // Predicated region
    $region18: #{tpu_custom_call.1} parent=1 // pred_check
      _
    $region19: #{tpu_custom_call.1} parent=1 // pred_check_branch
      %254 = sbr.rel (0) target = $region21
    $region20: #{tpu_custom_call.1} parent=1 // pred_region
      %255 = dma.done [#allocation3], 64
    $region21: #{tpu_custom_call.1} parent=1 // pred_fallthru
      _
    %256 = vsyncpa [#allocation3], 1

</llo_original>
